<compile_context>
chip_gen: v5e
topology: v5e:2x2
jax: 0.10.0
libtpu: 0.0.40
codegen_flags: <defaults>
</compile_context>

<pallas_src>
import functools

import jax
import jax.numpy as jnp
from jax.experimental import pallas as pl
from jax.experimental.pallas import tpu as pltpu

LANE = 128                      # TPU lane width (hidden dims padded to it)
_BIAS_ROWS = 8                  # one sublane tile holding b1/b2/b3
_PACKED_ROWS = 3 * LANE + _BIAS_ROWS   # 3 (128,128) weights + bias tile = 392


def _round_up(n, m):
    return ((n + m - 1) // m) * m


# ----------------------------------------------------------------------------
# Kernel: one batch tile of the full fused MLP.
#   x_ref : (TILE_B, d_in)     activations at (near-)native width, f32
#   p_ref : (392, 128)         packed params (bf16 default, f32 supported):
#             rows   0:128  W1 (rows 0:d_in used)   rows 128:256  W2
#             rows 256:384  W3                      rows 384:392  bias tile
#                                                    (row 384=b1, 385=b2, 386=b3)
#   o_ref : (TILE_B, 8)        logits, f32 (only cols 0:3 meaningful)
# ----------------------------------------------------------------------------
def _mlp_kernel(x_ref, p_ref, o_ref, *, d_in):
    cdt = p_ref.dtype                       # MXU operand dtype (bf16 or f32)

    w1 = p_ref[0:d_in, :]                   # (d_in, 128)
    w2 = p_ref[LANE:2 * LANE, :]            # (128, 128); rows >=64 are zero
    w3 = p_ref[2 * LANE:3 * LANE, :]        # (128, 128); rows >=32 are zero
    bias = p_ref[3 * LANE:3 * LANE + _BIAS_ROWS, :].astype(jnp.float32)
    b1 = bias[0:1, :]
    b2 = bias[1:2, :]
    b3 = bias[2:3, :]

    x = x_ref[...].astype(cdt)              # (tile_b, d_in)

    # fc1 + ReLU   (MXU matmul, f32 accumulate; elementwise stays f32 for v5e)
    h1 = jnp.dot(x, w1, preferred_element_type=jnp.float32)
    h1 = jnp.maximum(h1 + b1, 0.0)
    # fc2 + ReLU
    h2 = jnp.dot(h1.astype(cdt), w2, preferred_element_type=jnp.float32)
    h2 = jnp.maximum(h2 + b2, 0.0)
    # fc3 (logits, no activation — matches the PyTorch forward)
    o = jnp.dot(h2.astype(cdt), w3, preferred_element_type=jnp.float32) + b3
    # Narrow (8-lane) f32 writeback; padded lanes 3:8 carry zeros.
    o_ref[...] = o[:, :o_ref.shape[-1]].astype(o_ref.dtype)


# ----------------------------------------------------------------------------
# Parameter packing: six (in,out)-layout tensors -> one lane-dense buffer.
# Padded rows/cols are exact zeros so the math is unchanged.
# ----------------------------------------------------------------------------
def pack_params(params, param_dtype=jnp.bfloat16):
    w1, b1, w2, b2, w3, b3 = params
    assert w1.shape[0] <= LANE, "input_dim must be <= 128"
    # TODO(synk): add a K-tiling path for input_dim > 128.
    assert w1.shape[1] <= LANE and w2.shape[1] <= LANE and w3.shape[1] <= LANE

    def pad_w(w):
        out = jnp.zeros((LANE, LANE), param_dtype)
        return out.at[: w.shape[0], : w.shape[1]].set(w.astype(param_dtype))

    def pad_b(b):
        b = b.reshape(-1)
        out = jnp.zeros((LANE,), param_dtype)
        return out.at[: b.shape[0]].set(b.astype(param_dtype))

    bias_tile = jnp.zeros((_BIAS_ROWS, LANE), param_dtype)
    bias_tile = bias_tile.at[0].set(pad_b(b1))
    bias_tile = bias_tile.at[1].set(pad_b(b2))
    bias_tile = bias_tile.at[2].set(pad_b(b3))

    packed = jnp.concatenate([pad_w(w1), pad_w(w2), pad_w(w3), bias_tile], axis=0)
    assert packed.shape == (_PACKED_ROWS, LANE)
    return packed


# ----------------------------------------------------------------------------
# Wrapper
# ----------------------------------------------------------------------------
@functools.partial(jax.jit, static_argnames=("out_dim", "tile_b"))
def lung_cancer_nn_forward(x, packed_params, out_dim=3, tile_b=None):
    """Fused MLP forward: (fc1 -> relu -> fc2 -> relu -> fc3)."""
    B, D = x.shape
    assert D <= LANE, "input_dim must be <= 128"
    assert out_dim <= _BIAS_ROWS
    d_in = _round_up(D, 8)      # sublane-align the fc1 contraction dim only

    if tile_b is None:
        # Balanced tiles: padding waste <8 rows/tile; >=2 grid steps for
        # non-tiny batches so v7x megacore can split the batch axis; tiles
        # capped at ~1024 rows (VMEM footprint is a few hundred KiB, safe on
        # every generation while amortizing the ~0.35us per-step overhead).
        n_tiles = max(pl.cdiv(B, 1024), 2 if B >= 64 else 1)
        tile_b = _round_up(pl.cdiv(B, n_tiles), 8)
    else:
        tile_b = _round_up(tile_b, 8)
    b_pad = _round_up(B, tile_b)
    n_tiles = b_pad // tile_b

    x_in = x.astype(jnp.float32)
    if (b_pad, d_in) != (B, D):
        # Minimal zero pad: <=7 feature cols and <8 rows per tile.
        x_in = jnp.pad(x_in, ((0, b_pad - B), (0, d_in - D)))

    out_lanes = _BIAS_ROWS      # 8-lane output block (== full array last dim)

    param_bytes = packed_params.size * packed_params.dtype.itemsize
    flops = 2 * b_pad * LANE * (d_in + LANE + LANE)
    bytes_accessed = x_in.size * 4 + b_pad * out_lanes * 4 + param_bytes

    out = pl.pallas_call(
        functools.partial(_mlp_kernel, d_in=d_in),
        out_shape=jax.ShapeDtypeStruct((b_pad, out_lanes), jnp.float32),
        grid=(n_tiles,),
        in_specs=[
            pl.BlockSpec((tile_b, d_in), lambda i: (i, 0)),        # x tile
            pl.BlockSpec((_PACKED_ROWS, LANE), lambda i: (0, 0)),  # params (resident)
        ],
        out_specs=pl.BlockSpec((tile_b, out_lanes), lambda i: (i, 0)),
        compiler_params=pltpu.CompilerParams(
            dimension_semantics=("parallel",)),
        cost_estimate=pl.CostEstimate(
            flops=flops, transcendentals=0, bytes_accessed=bytes_accessed),
    )(x_in, packed_params)

    return out[:B, :out_dim]


# ----------------------------------------------------------------------------
# Init matching PyTorch nn.Linear default: U(-1/sqrt(fan_in), +1/sqrt(fan_in)),
# weights stored (in, out) so the kernel computes x @ W + b.
# ----------------------------------------------------------------------------
def init_params(key, input_dim, hidden_dim1=64, hidden_dim2=32, output_dim=3):
    ks = jax.random.split(key, 6)

    def linear(kw, kb, fan_in, fan_out):
        bound = 1.0 / jnp.sqrt(fan_in)
        w = jax.random.uniform(kw, (fan_in, fan_out), jnp.float32, -bound, bound)
        b = jax.random.uniform(kb, (1, fan_out), jnp.float32, -bound, bound)
        return w, b

    w1, b1 = linear(ks[0], ks[1], input_dim, hidden_dim1)
    w2, b2 = linear(ks[2], ks[3], hidden_dim1, hidden_dim2)
    w3, b3 = linear(ks[4], ks[5], hidden_dim2, output_dim)
    return (w1, b1, w2, b2, w3, b3)


def reference_forward(x, params, param_dtype=jnp.bfloat16):
    """Plain-JAX reference mirroring the kernel's dtype discipline."""
    prec = jax.lax.Precision.HIGHEST
    w1, b1, w2, b2, w3, b3 = [p.astype(param_dtype) for p in params]
    xc = x.astype(param_dtype)
    h = jnp.dot(xc, w1, preferred_element_type=jnp.float32,
                precision=prec) + b1.astype(jnp.float32)
    h = jnp.maximum(h, 0.0)
    h = jnp.dot(h.astype(param_dtype), w2, preferred_element_type=jnp.float32,
                precision=prec) + b2.astype(jnp.float32)
    h = jnp.maximum(h, 0.0)
    return jnp.dot(h.astype(param_dtype), w3, preferred_element_type=jnp.float32,
                   precision=prec) + b3.astype(jnp.float32)


if __name__ == "__main__":
    key = jax.random.PRNGKey(0)
    k_x, k_p, k_x2 = jax.random.split(key, 3)

    batch = 8
    input_dim = 16          # tabular features after StandardScaler
    x = jax.random.normal(k_x, (batch, input_dim), dtype=jnp.float32)
    params = init_params(k_p, input_dim)

    # --- bf16 MXU operands (default on all generations), f32 accumulate ------
    packed_bf16 = pack_params(params, jnp.bfloat16)
    out = jax.block_until_ready(lung_cancer_nn_forward(x, packed_bf16))
    ref = reference_forward(x, params, jnp.bfloat16)
    assert out.shape == (batch, 3)
    assert jnp.allclose(out, ref, atol=2e-2, rtol=2e-2), "bf16 mismatch"

    # --- optional f32 parameter storage --------------------------------------
    packed_f32 = pack_params(params, jnp.float32)
    out_f32 = jax.block_until_ready(lung_cancer_nn_forward(x, packed_f32))
    ref_f32 = reference_forward(x, params, jnp.float32)
    assert jnp.allclose(out_f32, ref_f32, atol=1e-3, rtol=1e-3), "f32 mismatch"

    # --- larger, non-multiple batch: balanced 2-tile parallel grid -----------
    big_batch = 300
    x_big = jax.random.normal(k_x2, (big_batch, input_dim), dtype=jnp.float32)
    out_big = jax.block_until_ready(lung_cancer_nn_forward(x_big, packed_bf16))
    ref_big = reference_forward(x_big, params, jnp.bfloat16)
    assert out_big.shape == (big_batch, 3)
    assert jnp.allclose(out_big, ref_big, atol=2e-2, rtol=2e-2), "tiled mismatch"

    print("KERNEL_OK")
</pallas_src>

<mosaic_0001>
module attributes {stable_mosaic.version = 11 : i64} {
  func.func @_mlp_kernel(%arg0: i32, %arg1: memref<8x16xf32, #tpu.memory_space<vmem>>, %arg2: memref<392x128xbf16, #tpu.memory_space<vmem>>, %arg3: memref<8x8xf32, #tpu.memory_space<vmem>>) attributes {dimension_semantics = [#tpu.dimension_semantics<parallel>], iteration_bounds = array<i64: 1>, scalar_prefetch = 0 : i64, scratch_operands = 0 : i64, tpu.core_type = #tpu.core_type<tc>, window_params = [{transform_indices = @transform_0, window_bounds = array<i64: 8, 16>}, {pipeline_mode = #tpu.pipeline_mode<synchronous>, transform_indices = @transform_1, window_bounds = array<i64: 392, 128>}, {transform_indices = @transform_2, window_bounds = array<i64: 8, 8>}]} {
    %c0 = arith.constant 0 : index
    %c0_0 = arith.constant 0 : index
    %0 = vector.load %arg2[%c0, %c0_0] : memref<392x128xbf16, #tpu.memory_space<vmem>>, vector<16x128xbf16>
    %c128 = arith.constant 128 : index
    %c0_1 = arith.constant 0 : index
    %1 = vector.load %arg2[%c128, %c0_1] : memref<392x128xbf16, #tpu.memory_space<vmem>>, vector<128x128xbf16>
    %c256 = arith.constant 256 : index
    %c0_2 = arith.constant 0 : index
    %2 = vector.load %arg2[%c256, %c0_2] : memref<392x128xbf16, #tpu.memory_space<vmem>>, vector<128x128xbf16>
    %c384 = arith.constant 384 : index
    %c0_3 = arith.constant 0 : index
    %3 = vector.load %arg2[%c384, %c0_3] : memref<392x128xbf16, #tpu.memory_space<vmem>>, vector<8x128xbf16>
    %4 = arith.extf %3 : vector<8x128xbf16> to vector<8x128xf32>
    %5 = vector.extract_strided_slice %4 {offsets = [0, 0], sizes = [1, 128], strides = [1, 1]} : vector<8x128xf32> to vector<1x128xf32>
    %6 = vector.extract_strided_slice %4 {offsets = [1, 0], sizes = [1, 128], strides = [1, 1]} : vector<8x128xf32> to vector<1x128xf32>
    %7 = vector.extract_strided_slice %4 {offsets = [2, 0], sizes = [1, 128], strides = [1, 1]} : vector<8x128xf32> to vector<1x128xf32>
    %c0_4 = arith.constant 0 : index
    %c0_5 = arith.constant 0 : index
    %8 = vector.load %arg1[%c0_4, %c0_5] : memref<8x16xf32, #tpu.memory_space<vmem>>, vector<8x16xf32>
    %9 = arith.truncf %8 : vector<8x16xf32> to vector<8x16xbf16>
    %cst = arith.constant dense<0.000000e+00> : vector<8x128xf32>
    %10 = tpu.matmul %9, %0, %cst {dimension_numbers = #tpu.dot_dimension_numbers<[1], [0], [0], [1], [0, 0, 1, 1], [], []>} : vector<8x16xbf16>, vector<16x128xbf16>, vector<8x128xf32> -> vector<8x128xf32>
    %11 = vector.broadcast %5 : vector<1x128xf32> to vector<8x128xf32>
    %12 = arith.addf %10, %11 : vector<8x128xf32>
    %cst_6 = arith.constant 0.000000e+00 : f32
    %13 = vector.broadcast %cst_6 : f32 to vector<8x128xf32>
    %14 = arith.maximumf %12, %13 : vector<8x128xf32>
    %15 = arith.truncf %14 : vector<8x128xf32> to vector<8x128xbf16>
    %cst_7 = arith.constant dense<0.000000e+00> : vector<8x128xf32>
    %16 = tpu.matmul %15, %1, %cst_7 {dimension_numbers = #tpu.dot_dimension_numbers<[1], [0], [0], [1], [0, 0, 1, 1], [], []>} : vector<8x128xbf16>, vector<128x128xbf16>, vector<8x128xf32> -> vector<8x128xf32>
    %17 = vector.broadcast %6 : vector<1x128xf32> to vector<8x128xf32>
    %18 = arith.addf %16, %17 : vector<8x128xf32>
    %cst_8 = arith.constant 0.000000e+00 : f32
    %19 = vector.broadcast %cst_8 : f32 to vector<8x128xf32>
    %20 = arith.maximumf %18, %19 : vector<8x128xf32>
    %21 = arith.truncf %20 : vector<8x128xf32> to vector<8x128xbf16>
    %cst_9 = arith.constant dense<0.000000e+00> : vector<8x128xf32>
    %22 = tpu.matmul %21, %2, %cst_9 {dimension_numbers = #tpu.dot_dimension_numbers<[1], [0], [0], [1], [0, 0, 1, 1], [], []>} : vector<8x128xbf16>, vector<128x128xbf16>, vector<8x128xf32> -> vector<8x128xf32>
    %23 = vector.broadcast %7 : vector<1x128xf32> to vector<8x128xf32>
    %24 = arith.addf %22, %23 : vector<8x128xf32>
    %25 = vector.extract_strided_slice %24 {offsets = [0, 0], sizes = [8, 8], strides = [1, 1]} : vector<8x128xf32> to vector<8x8xf32>
    %c0_10 = arith.constant 0 : index
    %c0_11 = arith.constant 0 : index
    %26 = vector.load %arg3[%c0_10, %c0_11] : memref<8x8xf32, #tpu.memory_space<vmem>>, vector<8x8xf32>
    tpu.vector_store %arg3[%c0_10, %c0_11], %25 {strides = array<i32>} : memref<8x8xf32, #tpu.memory_space<vmem>>, vector<8x8xf32>,
    return
  }
  func.func @transform_0(%arg0: i32) -> (i32, i32) {
    %c0_i32 = arith.constant 0 : i32
    %c0_i32_0 = arith.constant 0 : i32
    return %arg0, %c0_i32 : i32, i32
  }
  func.func @transform_1(%arg0: i32) -> (i32, i32) {
    %c0_i32 = arith.constant 0 : i32
    %c0_i32_0 = arith.constant 0 : i32
    %c0_i32_1 = arith.constant 0 : i32
    return %c0_i32, %c0_i32_0 : i32, i32
  }
  func.func @transform_2(%arg0: i32) -> (i32, i32) {
    %c0_i32 = arith.constant 0 : i32
    %c0_i32_0 = arith.constant 0 : i32
    return %arg0, %c0_i32 : i32, i32
  }
}

</mosaic_0001>

<llo_original>
// kernel: lung_cancer_nn_forward.1
$region0: #{lung_cancer_nn_forward.1}
  #allocation0 [shape = 'u32[]', space=smem, size = 0x4, offset = 0x4, fixed_abs, tag = 'smem constant byte address 0x4 - core index']
  #allocation1 [shape = 'u32[72,128]{1,0:T(1,128)}', space=vmem, size = 0x9000, scoped, tag = 'internal scratch']
  %s0 = inlined_call_operand.hbm [shape: f32[8,16], index: 0, kind: input, shape index: {}]
  %s1 = inlined_call_operand.hbm [shape: bf16[392,128], index: 1, kind: input, shape index: {}]
  %s2 = inlined_call_operand.vmem [shape: f32[8,8], index: 2, kind: output, shape index: {}]
  %s3 = sld [smem:[#allocation0]]
  $region26: #{lung_cancer_nn_forward.1} parent=0
    _
  %s5 = ssub.s32 1, %s3
  %s6 = scalar_select 0, %s5, %s3
  $region1: #{lung_cancer_nn_forward.1} parent=0
    #allocation2 [shape = 'u8[4096]{0}', space=vmem, size = 0x1000, scoped, tag = 'input window, operand 0, single buffered']
    #allocation3 [shape = 's32[1]{0}', space=sflag, size = 0x4, scoped, tag = 'scoped memory for lung_cancer_nn_forward.1']
    #allocation4 [shape = 'u8[100352]{0}', space=vmem, size = 0x18800, scoped, tag = 'input window, operand 1, single buffered']
    #allocation5 [shape = 's32[1]{0}', space=sflag, size = 0x4, scoped, tag = 'scoped memory for lung_cancer_nn_forward.1']
    %7 = vsyncpa [#allocation3], 0
    %8 = vsyncpa [#allocation5], 0
    // Predicated region
    $region2: #{lung_cancer_nn_forward.1} parent=1 // pred_check
      _
    $region3: #{lung_cancer_nn_forward.1} parent=1 // pred_check_branch
      %10 = sbr.rel (0) target = $region5
    $region4: #{lung_cancer_nn_forward.1} parent=1 // pred_region
      %12 = vsyncadd [#allocation3], 0
      %s14 = sshll.u32 %s0, 4
      %s15 = int_to_ptr.hbm [resolvable:$true] %s14
      %s16 = sshll.u32 [#allocation2], 4
      %s17 = int_to_ptr.vmem [resolvable:$true] %s16
      %19 = dma.hbm_to_vmem [thread:$0]  %s15, 128, %s17, [#allocation3]
    $region5: #{lung_cancer_nn_forward.1} parent=1 // pred_fallthru
      _
    // Predicated region
    $region6: #{lung_cancer_nn_forward.1} parent=1 // pred_check
      _
    $region7: #{lung_cancer_nn_forward.1} parent=1 // pred_check_branch
      %21 = sbr.rel (0) target = $region9
    $region8: #{lung_cancer_nn_forward.1} parent=1 // pred_region
      %23 = vsyncadd [#allocation5], 0
      %s24 = sshll.u32 %s1, 4
      %s25 = int_to_ptr.hbm [resolvable:$true] %s24
      %s26 = sshll.u32 [#allocation4], 4
      %s27 = int_to_ptr.vmem [resolvable:$true] %s26
      %32 = dma.hbm_to_vmem [thread:$0]  %s25, 3136, %s27, [#allocation5], 64, 64, 4
    $region9: #{lung_cancer_nn_forward.1} parent=1 // pred_fallthru
      _
    // Predicated region
    $region10: #{lung_cancer_nn_forward.1} parent=1 // pred_check
      _
    $region11: #{lung_cancer_nn_forward.1} parent=1 // pred_check_branch
      %34 = sbr.rel (0) target = $region13
    $region12: #{lung_cancer_nn_forward.1} parent=1 // pred_region
      %36 = dma.done [#allocation3], 128
    $region13: #{lung_cancer_nn_forward.1} parent=1 // pred_fallthru
      _
    // Predicated region
    $region14: #{lung_cancer_nn_forward.1} parent=1 // pred_check
      _
    $region15: #{lung_cancer_nn_forward.1} parent=1 // pred_check_branch
      %38 = sbr.rel (0) target = $region17
    $region16: #{lung_cancer_nn_forward.1} parent=1 // pred_region
      %40 = dma.done [#allocation5], 3136
    $region17: #{lung_cancer_nn_forward.1} parent=1 // pred_fallthru
      _
    %v42 = vld [vmem:[#allocation4] sm:$0xf]
    %v43 = vld [vmem:[#allocation4 + $0x4] sm:$0xf]
    %v44 = vld [vmem:[#allocation4 + $0x40] sm:$0xf]
    %v45 = vld [vmem:[#allocation4 + $0x44] sm:$0xf]
    %v46 = vld [vmem:[#allocation4 + $0x48] sm:$0xf]
    %v47 = vld [vmem:[#allocation4 + $0x4c] sm:$0xf]
    %v48 = vld [vmem:[#allocation4 + $0x50] sm:$0xf]
    %v49 = vld [vmem:[#allocation4 + $0x54] sm:$0xf]
    %v50 = vld [vmem:[#allocation4 + $0x58] sm:$0xf]
    %v51 = vld [vmem:[#allocation4 + $0x5c] sm:$0xf]
    %v52 = vld [vmem:[#allocation4 + $0x60] sm:$0xf]
    %v53 = vld [vmem:[#allocation4 + $0x64] sm:$0xf]
    %v54 = vld [vmem:[#allocation4 + $0x68] sm:$0xf]
    %v55 = vld [vmem:[#allocation4 + $0x6c] sm:$0xf]
    %v56 = vld [vmem:[#allocation4 + $0x70] sm:$0xf]
    %v57 = vld [vmem:[#allocation4 + $0x74] sm:$0xf]
    %v58 = vld [vmem:[#allocation4 + $0x78] sm:$0xf]
    %v59 = vld [vmem:[#allocation4 + $0x7c] sm:$0xf]
    %v60 = vld [vmem:[#allocation4 + $0x80] sm:$0xf]
    %v61 = vld [vmem:[#allocation4 + $0x84] sm:$0xf]
    %v62 = vld [vmem:[#allocation4 + $0x88] sm:$0xf]
    %v63 = vld [vmem:[#allocation4 + $0x8c] sm:$0xf]
    %v64 = vld [vmem:[#allocation4 + $0x90] sm:$0xf]
    %v65 = vld [vmem:[#allocation4 + $0x94] sm:$0xf]
    %v66 = vld [vmem:[#allocation4 + $0x98] sm:$0xf]
    %v67 = vld [vmem:[#allocation4 + $0x9c] sm:$0xf]
    %v68 = vld [vmem:[#allocation4 + $0xa0] sm:$0xf]
    %v69 = vld [vmem:[#allocation4 + $0xa4] sm:$0xf]
    %v70 = vld [vmem:[#allocation4 + $0xa8] sm:$0xf]
    %v71 = vld [vmem:[#allocation4 + $0xac] sm:$0xf]
    %v72 = vld [vmem:[#allocation4 + $0xb0] sm:$0xf]
    %v73 = vld [vmem:[#allocation4 + $0xb4] sm:$0xf]
    %v74 = vld [vmem:[#allocation4 + $0xb8] sm:$0xf]
    %v75 = vld [vmem:[#allocation4 + $0xbc] sm:$0xf]
    %v76 = vld [vmem:[#allocation4 + $0xc0] sm:$0xf]
    %v77 = vunpack.c.l.bf16 %v76
    %v78 = vld [vmem:[#allocation2] sm:$0xff]
    %v79 = vpack.c.bf16 %v78, %v78
    %v80 = vperm.slane %v77, 0
    %v83 = vunpack.c.l.b16 %v42
    %v84 = vunpack.c.l.b16 %v43
    %v85 = vpack.c.b16 %v84, %v83
    %vm87 = vcmask 130048
    %v89 = vsel %vm87, %v79, 0
    %91 = vmatpush.bf16.msra.mxu0 0
    %92 = vmatpush.bf16.msra.mxu0 0
    %93 = vmatpush.bf16.msra.mxu0 0
    %94 = vmatpush.bf16.msra.mxu0 0
    %95 = vmatpush.bf16.msra.mxu0 0
    %96 = vmatpush.bf16.msra.mxu0 0
    %97 = vmatpush.bf16.msra.mxu0 0
    %98 = vmatpush.bf16.msra.mxu0 %v85
    %99 = vmatmul.bf16.gmra.mxu0 %v89
    %v100 = vpop.f32.mrf.mxu0
    %v101 = vadd.f32 %v80, %v100
    %v102 = vpop.f32.mrf.mxu0
    %103 = vdwg.mxu0
    %v104 = vmax.f32 %v101, 0.0
    %v105 = vpack.c.bf16 %v104, %v104
    %v106 = vperm.slane %v77, 1
    %v123 = vunpack.c.l.b16 %v44
    %v124 = vunpack.c.l.b16 %v45
    %v125 = vunpack.c.l.b16 %v46
    %v126 = vunpack.c.l.b16 %v47
    %v127 = vunpack.c.l.b16 %v48
    %v128 = vunpack.c.l.b16 %v49
    %v129 = vunpack.c.l.b16 %v50
    %v130 = vunpack.c.l.b16 %v51
    %v131 = vunpack.c.l.b16 %v52
    %v132 = vunpack.c.l.b16 %v53
    %v133 = vunpack.c.l.b16 %v54
    %v134 = vunpack.c.l.b16 %v55
    %v135 = vunpack.c.l.b16 %v56
    %v136 = vunpack.c.l.b16 %v57
    %v137 = vunpack.c.l.b16 %v58
    %v138 = vunpack.c.l.b16 %v59
    %v139 = vpack.c.b16 %v124, %v123
    %v140 = vpack.c.b16 %v126, %v125
    %v141 = vpack.c.b16 %v128, %v127
    %v142 = vpack.c.b16 %v130, %v129
    %v143 = vpack.c.b16 %v132, %v131
    %v144 = vpack.c.b16 %v134, %v133
    %v145 = vpack.c.b16 %v136, %v135
    %v146 = vpack.c.b16 %v138, %v137
    %155 = vmatpush.bf16.msra.mxu0 %v146
    %156 = vmatpush.bf16.msra.mxu0 %v145
    %157 = vmatpush.bf16.msra.mxu0 %v144
    %158 = vmatpush.bf16.msra.mxu0 %v143
    %159 = vmatpush.bf16.msra.mxu0 %v142
    %160 = vmatpush.bf16.msra.mxu0 %v141
    %161 = vmatpush.bf16.msra.mxu0 %v140
    %162 = vmatpush.bf16.msra.mxu0 %v139
    %163 = vmatmul.bf16.gmra.mxu0 %v105
    %v164 = vpop.f32.mrf.mxu0
    %v165 = vadd.f32 %v106, %v164
    %v166 = vpop.f32.mrf.mxu0
    %167 = vdwg.mxu0
    %v168 = vmax.f32 %v165, 0.0
    %v169 = vpack.c.bf16 %v168, %v168
    %v170 = vperm.slane %v77, 2
    %v187 = vunpack.c.l.b16 %v60
    %v188 = vunpack.c.l.b16 %v61
    %v189 = vunpack.c.l.b16 %v62
    %v190 = vunpack.c.l.b16 %v63
    %v191 = vunpack.c.l.b16 %v64
    %v192 = vunpack.c.l.b16 %v65
    %v193 = vunpack.c.l.b16 %v66
    %v194 = vunpack.c.l.b16 %v67
    %v195 = vunpack.c.l.b16 %v68
    %v196 = vunpack.c.l.b16 %v69
    %v197 = vunpack.c.l.b16 %v70
    %v198 = vunpack.c.l.b16 %v71
    %v199 = vunpack.c.l.b16 %v72
    %v200 = vunpack.c.l.b16 %v73
    %v201 = vunpack.c.l.b16 %v74
    %v202 = vunpack.c.l.b16 %v75
    %v203 = vpack.c.b16 %v188, %v187
    %v204 = vpack.c.b16 %v190, %v189
    %v205 = vpack.c.b16 %v192, %v191
    %v206 = vpack.c.b16 %v194, %v193
    %v207 = vpack.c.b16 %v196, %v195
    %v208 = vpack.c.b16 %v198, %v197
    %v209 = vpack.c.b16 %v200, %v199
    %v210 = vpack.c.b16 %v202, %v201
    %219 = vmatpush.bf16.msra.mxu0 %v210
    %220 = vmatpush.bf16.msra.mxu0 %v209
    %221 = vmatpush.bf16.msra.mxu0 %v208
    %222 = vmatpush.bf16.msra.mxu0 %v207
    %223 = vmatpush.bf16.msra.mxu0 %v206
    %224 = vmatpush.bf16.msra.mxu0 %v205
    %225 = vmatpush.bf16.msra.mxu0 %v204
    %226 = vmatpush.bf16.msra.mxu0 %v203
    %227 = vmatmul.bf16.gmra.mxu0 %v169
    %v228 = vpop.f32.mrf.mxu0
    %v229 = vadd.f32 %v170, %v228
    %v230 = vpop.f32.mrf.mxu0
    %231 = vdwg.mxu0
    %vm232 = vcmask 64512
    %233 = vst.msk [vmem:[%s2] sm:$0xff] %vm232, %v229
    // Predicated region
    $region18: #{lung_cancer_nn_forward.1} parent=1 // pred_check
      _
    $region19: #{lung_cancer_nn_forward.1} parent=1 // pred_check_branch
      %235 = sbr.rel (0) target = $region21
    $region20: #{lung_cancer_nn_forward.1} parent=1 // pred_region
      _
    $region21: #{lung_cancer_nn_forward.1} parent=1 // pred_fallthru
      _
    // Predicated region
    $region22: #{lung_cancer_nn_forward.1} parent=1 // pred_check
      _
    $region23: #{lung_cancer_nn_forward.1} parent=1 // pred_check_branch
      %237 = sbr.rel (0) target = $region25
    $region24: #{lung_cancer_nn_forward.1} parent=1 // pred_region
      _
    $region25: #{lung_cancer_nn_forward.1} parent=1 // pred_fallthru
      _
    %238 = vsyncpa [#allocation3], 1
    %239 = vsyncpa [#allocation5], 1

</llo_original>
